<compile_context>
chip_gen: v7x
topology: tpu7x:2x2x1
jax: 0.10.0
libtpu: 0.0.40
codegen_flags: <defaults>
</compile_context>

<pallas_src>
import jax
import jax.numpy as jnp
from jax.experimental import pallas as pl
from jax.experimental.pallas import tpu as pltpu


# --------------------------------------------------------------------------- #
# Kernel
# --------------------------------------------------------------------------- #
def linear_probe_kernel(x_ref, w12_ref, wt_ref, b_ref, o_ref):
    E = w12_ref.shape[1]          # embed size
    W = wt_ref.shape[1]           # E // 2 (tail lane width)
    f32 = jnp.float32
    cdt = w12_ref.dtype           # compute dtype (bf16 or f32)

    x = x_ref[...]                # (TB, E) compute dtype (CLS features)
    b = b_ref[...]                # (8, E)  f32 biases

    # --- DebertaBase.mlp: Linear(E,E) + LeakyReLU(0.01), twice ---
    h = jnp.dot(x, w12_ref[0:E, :], preferred_element_type=f32) + b[0:1, :]
    h = jnp.where(h > 0, h, 0.01 * h)
    h = jnp.dot(h.astype(cdt), w12_ref[E:2 * E, :],
                preferred_element_type=f32) + b[1:2, :]
    h = jnp.where(h > 0, h, 0.01 * h)

    # --- LinearProbe.mlp: Linear(E,E/2)+ReLU, Linear(E/2,E/4)+ReLU ---
    # Tail slab is W = E/2 lanes wide; layer-4 columns [W/2:W] are zero-padded
    # and stay exactly 0 through bias add + ReLU.
    h = jnp.dot(h.astype(cdt), wt_ref[0:E, :],
                preferred_element_type=f32) + b[2:3, 0:W]
    h = jnp.maximum(h, 0.0)
    h = jnp.dot(h.astype(cdt), wt_ref[E:E + W, :],
                preferred_element_type=f32) + b[3:4, 0:W]
    h = jnp.maximum(h, 0.0)

    # --- Linear(E/4, 2) + Softmax(dim=1), folded ---
    # Packed head columns give z[:,0] = l0-l1 and z[:,1] = l1-l0, so
    # sigmoid(z)[:, :2] == softmax([l0, l1], axis=1) exactly.
    z = jnp.dot(h.astype(cdt), wt_ref[E + W:E + 2 * W, :],
                preferred_element_type=f32)
    z2 = z[:, 0:2] + b[4:5, 0:2]                    # only the useful lanes
    o_ref[...] = (1.0 / (1.0 + jnp.exp(-z2))).astype(o_ref.dtype)


# --------------------------------------------------------------------------- #
# Parameter packing (done ONCE at init, not per forward call)
# --------------------------------------------------------------------------- #
def pack_params(params, E, compute_dtype=jnp.bfloat16):
    """Collapse the 5 Linear layers into two lane-trimmed weight slabs + biases.

    Returns:
      w12:    (2E, E)   compute_dtype  -- layers 1, 2
      w_tail: (2E, E/2) compute_dtype  -- layers 3, 4, 5(folded head)
      b_pack: (8, E)    f32            -- bias rows 0..4 (rest zero)
    """
    (w1, b1), (w2, b2), (w3, b3), (w4, b4), (w5, b5) = params
    W = E // 2

    w12 = jnp.concatenate([w1, w2], axis=0).astype(compute_dtype)      # (2E, E)

    w3p = w3.astype(jnp.float32)                                       # (E, W)
    w4p = jnp.zeros((W, W), jnp.float32).at[:, : W // 2].set(w4)       # (W, W)

    # Fold Linear(E//4, 2) + Softmax into antisymmetric logit-difference cols.
    dw = w5[:, 1] - w5[:, 0]                                           # (E//4,)
    db = b5[1] - b5[0]
    w5p = (jnp.zeros((W, W), jnp.float32)
           .at[: W // 2, 0].set(-dw)
           .at[: W // 2, 1].set(dw))

    w_tail = jnp.concatenate([w3p, w4p, w5p], axis=0).astype(compute_dtype)

    b_pack = jnp.zeros((8, E), jnp.float32)
    b_pack = b_pack.at[0, :].set(b1).at[1, :].set(b2)
    b_pack = b_pack.at[2, :W].set(b3).at[3, : W // 2].set(b4)
    b_pack = b_pack.at[4, 0].set(-db).at[4, 1].set(db)
    return w12, w_tail, b_pack


def _pick_tb(B, block_b):
    """Batch tile: multiple of 8, <= block_b; split mid-size batches into >=2
    tiles so the 'parallel' grid axis can feed both v7x TensorCores."""
    b8 = ((B + 7) // 8) * 8
    tb = min(block_b, b8)
    if tb == b8 and b8 > 128:
        tb = ((b8 // 2 + 7) // 8) * 8
    return tb


# --------------------------------------------------------------------------- #
# Forward wrapper
# --------------------------------------------------------------------------- #
def linear_probe_forward(input_ids, embed_table, packed, *, block_b=512):
    """input_ids: [B, S] int32 token ids; embed_table: [VOCAB, E] f32;
    packed: output of pack_params."""
    w12, w_tail, b_pack = packed
    B = input_ids.shape[0]
    E = w12.shape[1]
    cdt = w12.dtype

    # TODO(synk): the pretrained DeBERTa encoder has no Pallas equivalent; its
    # CLS feature is stood in by an embedding-table gather, done here in XLA so
    # the vocab-sized table never occupies kernel VMEM.
    x = jnp.take(embed_table, input_ids[:, 0], axis=0).astype(cdt)     # (B, E)

    TB = _pick_tb(B, block_b)
    B_pad = pl.cdiv(B, TB) * TB
    if B_pad != B:
        x = jnp.pad(x, ((0, B_pad - B), (0, 0)))

    # Explicit VMEM budget: single-buffered resident slabs + double-buffered
    # per-tile input/output, with headroom; capped for v7x's 64 MiB VMEM.
    resident = (w12.size * w12.dtype.itemsize
                + w_tail.size * w_tail.dtype.itemsize
                + b_pack.size * 4)
    tiles = 2 * (TB * E * x.dtype.itemsize + TB * 2 * 4)
    vmem_limit = int(min(max(2 * (resident + tiles) + (4 << 20), 32 << 20),
                         48 << 20))

    out = pl.pallas_call(
        linear_probe_kernel,
        out_shape=jax.ShapeDtypeStruct((B_pad, 2), jnp.float32),
        grid=(B_pad // TB,),
        in_specs=[
            # moving operand: CLS activations, default double-buffering
            pl.BlockSpec((TB, E), lambda i: (i, 0)),
            # resident operands: constant index map -> single-buffer them
            pl.BlockSpec(w12.shape, lambda i: (0, 0),
                         pipeline_mode=pl.Buffered(buffer_count=1)),
            pl.BlockSpec(w_tail.shape, lambda i: (0, 0),
                         pipeline_mode=pl.Buffered(buffer_count=1)),
            pl.BlockSpec(b_pack.shape, lambda i: (0, 0),
                         pipeline_mode=pl.Buffered(buffer_count=1)),
        ],
        out_specs=pl.BlockSpec((TB, 2), lambda i: (i, 0)),
        compiler_params=pltpu.CompilerParams(
            dimension_semantics=("parallel",),
            vmem_limit_bytes=vmem_limit),
    )(x, w12, w_tail, b_pack)

    return out[:B]


# --------------------------------------------------------------------------- #
# Synthetic init + pure-JAX reference
# --------------------------------------------------------------------------- #
def init_params(key, embed_size):
    """Deterministic synthetic weights with the shapes implied by __init__."""
    E = embed_size
    dims = [(E, E), (E, E), (E, E // 2), (E // 2, E // 4), (E // 4, 2)]
    params = []
    for i, (din, dout) in enumerate(dims):
        kw, kb = jax.random.split(jax.random.fold_in(key, i))
        scale = 1.0 / jnp.sqrt(jnp.float32(din))
        w = jax.random.uniform(kw, (din, dout), jnp.float32, -scale, scale)
        b = jax.random.uniform(kb, (dout,), jnp.float32, -scale, scale)
        params.append((w, b))
    return params


def reference_forward(input_ids, embed_table, params):
    """Pure-JAX reference matching the PyTorch forward (with the same stand-in)."""
    x = embed_table[input_ids[:, 0]]
    (w1, b1), (w2, b2), (w3, b3), (w4, b4), (w5, b5) = params
    h = x @ w1 + b1
    h = jnp.where(h > 0, h, 0.01 * h)
    h = h @ w2 + b2
    h = jnp.where(h > 0, h, 0.01 * h)
    h = jnp.maximum(h @ w3 + b3, 0.0)
    h = jnp.maximum(h @ w4 + b4, 0.0)
    logits = h @ w5 + b5
    return jax.nn.softmax(logits, axis=1)


if __name__ == "__main__":
    key = jax.random.PRNGKey(0)
    B, S, E, VOCAB = 8, 8, 32, 100

    k_ids, k_emb, k_par = jax.random.split(key, 3)
    input_ids = jax.random.randint(k_ids, (B, S), 0, VOCAB, dtype=jnp.int32)
    embed_table = jax.random.normal(k_emb, (VOCAB, E), jnp.float32) * 0.02
    params = init_params(k_par, E)

    ref = reference_forward(input_ids, embed_table, params)
    forward = jax.jit(linear_probe_forward)

    # f32 compute path: bit-faithful to the PyTorch forward semantics.
    packed_f32 = pack_params(params, E, compute_dtype=jnp.float32)
    out_f32 = jax.block_until_ready(forward(input_ids, embed_table, packed_f32))
    assert out_f32.shape == (B, 2)
    assert bool(jnp.allclose(jnp.sum(out_f32, axis=1), 1.0, atol=1e-5))
    assert bool(jnp.allclose(out_f32, ref, atol=2e-3))

    # bf16 weights/activations (v6e/v7x fast path), f32 accumulation.
    packed_bf16 = pack_params(params, E, compute_dtype=jnp.bfloat16)
    out_bf16 = jax.block_until_ready(forward(input_ids, embed_table, packed_bf16))
    assert out_bf16.shape == (B, 2)
    assert bool(jnp.allclose(jnp.sum(out_bf16, axis=1), 1.0, atol=1e-4))
    assert bool(jnp.allclose(out_bf16, ref, atol=5e-3))

    print("KERNEL_OK")
</pallas_src>

<mosaic_0001>
module attributes {stable_mosaic.version = 11 : i64} {
  func.func @linear_probe_kernel(%arg0: i32, %arg1: memref<8x32xf32, #tpu.memory_space<vmem>>, %arg2: memref<64x32xf32, #tpu.memory_space<vmem>>, %arg3: memref<64x16xf32, #tpu.memory_space<vmem>>, %arg4: memref<8x32xf32, #tpu.memory_space<vmem>>, %arg5: memref<8x2xf32, #tpu.memory_space<vmem>>) attributes {dimension_semantics = [#tpu.dimension_semantics<parallel>], iteration_bounds = array<i64: 1>, scalar_prefetch = 0 : i64, scratch_operands = 0 : i64, tpu.core_type = #tpu.core_type<tc>, window_params = [{transform_indices = @transform_0, window_bounds = array<i64: 8, 32>}, {pipeline_mode = #tpu.pipeline_mode<synchronous>, transform_indices = @transform_1, window_bounds = array<i64: 64, 32>}, {pipeline_mode = #tpu.pipeline_mode<synchronous>, transform_indices = @transform_2, window_bounds = array<i64: 64, 16>}, {pipeline_mode = #tpu.pipeline_mode<synchronous>, transform_indices = @transform_3, window_bounds = array<i64: 8, 32>}, {transform_indices = @transform_4, window_bounds = array<i64: 8, 2>}]} {
    %c0 = arith.constant 0 : index
    %c0_0 = arith.constant 0 : index
    %0 = vector.load %arg1[%c0, %c0_0] : memref<8x32xf32, #tpu.memory_space<vmem>>, vector<8x32xf32>
    %c0_1 = arith.constant 0 : index
    %c0_2 = arith.constant 0 : index
    %1 = vector.load %arg4[%c0_1, %c0_2] : memref<8x32xf32, #tpu.memory_space<vmem>>, vector<8x32xf32>
    %c0_3 = arith.constant 0 : index
    %c0_4 = arith.constant 0 : index
    %2 = vector.load %arg2[%c0_3, %c0_4] : memref<64x32xf32, #tpu.memory_space<vmem>>, vector<32x32xf32>
    %cst = arith.constant dense<0.000000e+00> : vector<8x32xf32>
    %3 = tpu.matmul %0, %2, %cst {dimension_numbers = #tpu.dot_dimension_numbers<[1], [0], [0], [1], [0, 0, 1, 1], [], []>} : vector<8x32xf32>, vector<32x32xf32>, vector<8x32xf32> -> vector<8x32xf32>
    %4 = vector.extract_strided_slice %1 {offsets = [0, 0], sizes = [1, 32], strides = [1, 1]} : vector<8x32xf32> to vector<1x32xf32>
    %5 = vector.broadcast %4 : vector<1x32xf32> to vector<8x32xf32>
    %6 = arith.addf %3, %5 : vector<8x32xf32>
    %cst_5 = arith.constant 0.000000e+00 : f32
    %7 = vector.broadcast %cst_5 : f32 to vector<8x32xf32>
    %8 = arith.cmpf ogt, %6, %7 : vector<8x32xf32>
    %cst_6 = arith.constant 0.00999999977 : f32
    %9 = vector.broadcast %cst_6 : f32 to vector<8x32xf32>
    %10 = arith.mulf %9, %6 : vector<8x32xf32>
    %11 = arith.select %8, %6, %10 : vector<8x32xi1>, vector<8x32xf32>
    %c32 = arith.constant 32 : index
    %c0_7 = arith.constant 0 : index
    %12 = vector.load %arg2[%c32, %c0_7] : memref<64x32xf32, #tpu.memory_space<vmem>>, vector<32x32xf32>
    %cst_8 = arith.constant dense<0.000000e+00> : vector<8x32xf32>
    %13 = tpu.matmul %11, %12, %cst_8 {dimension_numbers = #tpu.dot_dimension_numbers<[1], [0], [0], [1], [0, 0, 1, 1], [], []>} : vector<8x32xf32>, vector<32x32xf32>, vector<8x32xf32> -> vector<8x32xf32>
    %14 = vector.extract_strided_slice %1 {offsets = [1, 0], sizes = [1, 32], strides = [1, 1]} : vector<8x32xf32> to vector<1x32xf32>
    %15 = vector.broadcast %14 : vector<1x32xf32> to vector<8x32xf32>
    %16 = arith.addf %13, %15 : vector<8x32xf32>
    %cst_9 = arith.constant 0.000000e+00 : f32
    %17 = vector.broadcast %cst_9 : f32 to vector<8x32xf32>
    %18 = arith.cmpf ogt, %16, %17 : vector<8x32xf32>
    %cst_10 = arith.constant 0.00999999977 : f32
    %19 = vector.broadcast %cst_10 : f32 to vector<8x32xf32>
    %20 = arith.mulf %19, %16 : vector<8x32xf32>
    %21 = arith.select %18, %16, %20 : vector<8x32xi1>, vector<8x32xf32>
    %c0_11 = arith.constant 0 : index
    %c0_12 = arith.constant 0 : index
    %22 = vector.load %arg3[%c0_11, %c0_12] : memref<64x16xf32, #tpu.memory_space<vmem>>, vector<32x16xf32>
    %cst_13 = arith.constant dense<0.000000e+00> : vector<8x16xf32>
    %23 = tpu.matmul %21, %22, %cst_13 {dimension_numbers = #tpu.dot_dimension_numbers<[1], [0], [0], [1], [0, 0, 1, 1], [], []>} : vector<8x32xf32>, vector<32x16xf32>, vector<8x16xf32> -> vector<8x16xf32>
    %24 = vector.extract_strided_slice %1 {offsets = [2, 0], sizes = [1, 16], strides = [1, 1]} : vector<8x32xf32> to vector<1x16xf32>
    %25 = vector.broadcast %24 : vector<1x16xf32> to vector<8x16xf32>
    %26 = arith.addf %23, %25 : vector<8x16xf32>
    %cst_14 = arith.constant 0.000000e+00 : f32
    %27 = vector.broadcast %cst_14 : f32 to vector<8x16xf32>
    %28 = arith.maximumf %26, %27 : vector<8x16xf32>
    %c32_15 = arith.constant 32 : index
    %c0_16 = arith.constant 0 : index
    %29 = vector.load %arg3[%c32_15, %c0_16] : memref<64x16xf32, #tpu.memory_space<vmem>>, vector<16x16xf32>
    %cst_17 = arith.constant dense<0.000000e+00> : vector<8x16xf32>
    %30 = tpu.matmul %28, %29, %cst_17 {dimension_numbers = #tpu.dot_dimension_numbers<[1], [0], [0], [1], [0, 0, 1, 1], [], []>} : vector<8x16xf32>, vector<16x16xf32>, vector<8x16xf32> -> vector<8x16xf32>
    %31 = vector.extract_strided_slice %1 {offsets = [3, 0], sizes = [1, 16], strides = [1, 1]} : vector<8x32xf32> to vector<1x16xf32>
    %32 = vector.broadcast %31 : vector<1x16xf32> to vector<8x16xf32>
    %33 = arith.addf %30, %32 : vector<8x16xf32>
    %cst_18 = arith.constant 0.000000e+00 : f32
    %34 = vector.broadcast %cst_18 : f32 to vector<8x16xf32>
    %35 = arith.maximumf %33, %34 : vector<8x16xf32>
    %c48 = arith.constant 48 : index
    %c0_19 = arith.constant 0 : index
    %36 = vector.load %arg3[%c48, %c0_19] : memref<64x16xf32, #tpu.memory_space<vmem>>, vector<16x16xf32>
    %cst_20 = arith.constant dense<0.000000e+00> : vector<8x16xf32>
    %37 = tpu.matmul %35, %36, %cst_20 {dimension_numbers = #tpu.dot_dimension_numbers<[1], [0], [0], [1], [0, 0, 1, 1], [], []>} : vector<8x16xf32>, vector<16x16xf32>, vector<8x16xf32> -> vector<8x16xf32>
    %38 = vector.extract_strided_slice %37 {offsets = [0, 0], sizes = [8, 2], strides = [1, 1]} : vector<8x16xf32> to vector<8x2xf32>
    %39 = vector.extract_strided_slice %1 {offsets = [4, 0], sizes = [1, 2], strides = [1, 1]} : vector<8x32xf32> to vector<1x2xf32>
    %40 = vector.broadcast %39 : vector<1x2xf32> to vector<8x2xf32>
    %41 = arith.addf %38, %40 : vector<8x2xf32>
    %cst_21 = arith.constant 0.000000e+00 : f32
    %42 = vector.broadcast %cst_21 : f32 to vector<8x2xf32>
    %43 = arith.subf %42, %41 : vector<8x2xf32>
    %44 = math.exp %43 : vector<8x2xf32>
    %cst_22 = arith.constant 1.000000e+00 : f32
    %45 = vector.broadcast %cst_22 : f32 to vector<8x2xf32>
    %46 = arith.addf %45, %44 : vector<8x2xf32>
    %cst_23 = arith.constant 1.000000e+00 : f32
    %47 = vector.broadcast %cst_23 : f32 to vector<8x2xf32>
    %48 = arith.divf %47, %46 : vector<8x2xf32>
    %c0_24 = arith.constant 0 : index
    %c0_25 = arith.constant 0 : index
    %49 = vector.load %arg5[%c0_24, %c0_25] : memref<8x2xf32, #tpu.memory_space<vmem>>, vector<8x2xf32>
    tpu.vector_store %arg5[%c0_24, %c0_25], %48 {strides = array<i32>} : memref<8x2xf32, #tpu.memory_space<vmem>>, vector<8x2xf32>,
    return
  }
  func.func @transform_0(%arg0: i32) -> (i32, i32) {
    %c0_i32 = arith.constant 0 : i32
    %c0_i32_0 = arith.constant 0 : i32
    return %arg0, %c0_i32 : i32, i32
  }
  func.func @transform_1(%arg0: i32) -> (i32, i32) {
    %c0_i32 = arith.constant 0 : i32
    %c0_i32_0 = arith.constant 0 : i32
    %c0_i32_1 = arith.constant 0 : i32
    return %c0_i32, %c0_i32_0 : i32, i32
  }
  func.func @transform_2(%arg0: i32) -> (i32, i32) {
    %c0_i32 = arith.constant 0 : i32
    %c0_i32_0 = arith.constant 0 : i32
    %c0_i32_1 = arith.constant 0 : i32
    return %c0_i32, %c0_i32_0 : i32, i32
  }
  func.func @transform_3(%arg0: i32) -> (i32, i32) {
    %c0_i32 = arith.constant 0 : i32
    %c0_i32_0 = arith.constant 0 : i32
    %c0_i32_1 = arith.constant 0 : i32
    return %c0_i32, %c0_i32_0 : i32, i32
  }
  func.func @transform_4(%arg0: i32) -> (i32, i32) {
    %c0_i32 = arith.constant 0 : i32
    %c0_i32_0 = arith.constant 0 : i32
    return %arg0, %c0_i32 : i32, i32
  }
}

</mosaic_0001>

<llo_original>
// kernel: linear_probe_forward.1
$region0: #{linear_probe_forward.1}
  #allocation0 [shape = 'u32[]', space=smem, size = 0x4, offset = 0x4, fixed_abs, tag = 'smem constant byte address 0x4 - core index']
  #allocation1 [shape = 'u32[144,128]{1,0:T(1,128)}', space=vmem, size = 0x12000, scoped, tag = 'internal scratch']
  %s0 = inlined_call_operand.vmem [shape: f32[8,32], index: 0, kind: input, shape index: {}]
  %s1 = inlined_call_operand.vmem [shape: f32[64,32], index: 1, kind: input, shape index: {}]
  %s2 = inlined_call_operand.vmem [shape: f32[64,16], index: 2, kind: input, shape index: {}]
  %s3 = inlined_call_operand.vmem [shape: f32[8,32], index: 3, kind: input, shape index: {}]
  %s4 = inlined_call_operand.vmem [shape: f32[8,2], index: 4, kind: output, shape index: {}]
  %s5 = sld [smem:[#allocation0]]
  $region26: #{linear_probe_forward.1} parent=0
    _
  %s7 = ssub.s32 1, %s5
  %s8 = scalar_select 0, %s7, %s5
  // Predicated region
  $region2: #{linear_probe_forward.1} parent=0 // pred_check
    _
  $region3: #{linear_probe_forward.1} parent=0 // pred_check_branch
    %10 = sbr.rel (0) target = $region5
  $region4: #{linear_probe_forward.1} parent=0 // pred_region
    _
  $region5: #{linear_probe_forward.1} parent=0 // pred_fallthru
    _
  // Predicated region
  $region6: #{linear_probe_forward.1} parent=0 // pred_check
    _
  $region7: #{linear_probe_forward.1} parent=0 // pred_check_branch
    %12 = sbr.rel (0) target = $region9
  $region8: #{linear_probe_forward.1} parent=0 // pred_region
    _
  $region9: #{linear_probe_forward.1} parent=0 // pred_fallthru
    _
  // Predicated region
  $region10: #{linear_probe_forward.1} parent=0 // pred_check
    _
  $region11: #{linear_probe_forward.1} parent=0 // pred_check_branch
    %14 = sbr.rel (0) target = $region13
  $region12: #{linear_probe_forward.1} parent=0 // pred_region
    _
  $region13: #{linear_probe_forward.1} parent=0 // pred_fallthru
    _
  // Predicated region
  $region14: #{linear_probe_forward.1} parent=0 // pred_check
    _
  $region15: #{linear_probe_forward.1} parent=0 // pred_check_branch
    %16 = sbr.rel (0) target = $region17
  $region16: #{linear_probe_forward.1} parent=0 // pred_region
    _
  $region17: #{linear_probe_forward.1} parent=0 // pred_fallthru
    _
  %v17 = vld [vmem:[%s0] sm:$0xff]
  %v18 = vld [vmem:[%s3] sm:$0xff]
  %v19 = vld [vmem:[%s1] sm:$0xff]
  %v20 = vld [vmem:[%s1 + $0x8] sm:$0xff]
  %v21 = vld [vmem:[%s1 + $0x10] sm:$0xff]
  %v22 = vld [vmem:[%s1 + $0x18] sm:$0xff]
  %v23 = vlaneseq
  %v24 = vshrl.u32 %v23, 7
  %v25 = vsub.s32 0, %v24
  %v26 = vrot.slane %v18, %v25
  %vm27 = vcmask 261120
  %v29 = vsel %vm27, %v17, 0
  %31 = vmatprep.subr.mxu0 0.0
  %32 = vmatpush1.msra.mxu0 %v19
  %33 = vmatprep.subr.mxu0 0.0
  %34 = vmatpush1.msra.mxu0 %v20
  %35 = vmatprep.subr.mxu0 0.0
  %36 = vmatpush1.msra.mxu0 %v21
  %37 = vmatprep.subr.mxu0 0.0
  %38 = vmatpush1.msra.mxu0 %v22
  %39 = vmatprep.subr.mxu0 0.0
  %40 = vmatpush1.msra.mxu0 0.0
  %41 = vmatprep.subr.mxu0 0.0
  %42 = vmatpush1.msra.mxu0 0.0
  %43 = vmatprep.subr.mxu0 0.0
  %44 = vmatpush1.msra.mxu0 0.0
  %45 = vmatprep.subr.mxu0 0.0
  %46 = vmatpush1.msra.mxu0 0.0
  %47 = vmatprep.subr.mxu0 0.0
  %48 = vmatpush1.msra.mxu0 0.0
  %49 = vmatprep.subr.mxu0 0.0
  %50 = vmatpush1.msra.mxu0 0.0
  %51 = vmatprep.subr.mxu0 0.0
  %52 = vmatpush1.msra.mxu0 0.0
  %53 = vmatprep.subr.mxu0 0.0
  %54 = vmatpush1.msra.mxu0 0.0
  %55 = vmatprep.subr.mxu0 0.0
  %56 = vmatpush1.msra.mxu0 0.0
  %57 = vmatprep.subr.mxu0 0.0
  %58 = vmatpush1.msra.mxu0 0.0
  %59 = vmatprep.subr.mxu0 0.0
  %60 = vmatpush1.msra.mxu0 0.0
  %61 = vmatprep.subr.mxu0 0.0
  %62 = vmatpush1.msra.mxu0 0.0
  %63 = vmatprep.subr.mxu0 0.0
  %64 = vmatpush1.msra.mxu0 0.0
  %65 = vmatprep.subr.mxu0 0.0
  %66 = vmatpush1.msra.mxu0 0.0
  %67 = vmatprep.subr.mxu0 0.0
  %68 = vmatpush1.msra.mxu0 0.0
  %69 = vmatprep.subr.mxu0 0.0
  %70 = vmatpush1.msra.mxu0 0.0
  %71 = vmatprep.subr.mxu0 0.0
  %72 = vmatpush1.msra.mxu0 0.0
  %73 = vmatprep.subr.mxu0 0.0
  %74 = vmatpush1.msra.mxu0 0.0
  %75 = vmatprep.subr.mxu0 0.0
  %76 = vmatpush1.msra.mxu0 0.0
  %77 = vmatprep.subr.mxu0 0.0
  %78 = vmatpush1.msra.mxu0 0.0
  %79 = vmatprep.subr.mxu0 0.0
  %80 = vmatpush1.msra.mxu0 0.0
  %81 = vmatprep.subr.mxu0 0.0
  %82 = vmatpush1.msra.mxu0 0.0
  %83 = vmatprep.subr.mxu0 0.0
  %84 = vmatpush1.msra.mxu0 0.0
  %85 = vmatprep.subr.mxu0 0.0
  %86 = vmatpush1.msra.mxu0 0.0
  %87 = vmatprep.subr.mxu0 0.0
  %88 = vmatpush1.msra.mxu0 0.0
  %89 = vmatprep.subr.mxu0 0.0
  %90 = vmatpush1.msra.mxu0 0.0
  %91 = vmatprep.subr.mxu0 0.0
  %92 = vmatpush1.msra.mxu0 0.0
  %93 = vmatprep.subr.mxu0 0.0
  %94 = vmatpush1.msra.mxu0 0.0
  %95 = vmatprep.mubr.f32.mxu0 0.0
  %96 = vmatmul.mubr.f32.gmra.mrb[0].mxu0 %v29
  %v97 = vpop.f32.mrb[0].mxu0
  %v98 = vadd.f32 %v26, %v97
  %v99 = vpop.f32.mrb[0].mxu0
  %100 = vdwg.mxu0
  %vm101 = vcmp.gt.f32.partialorder %v98, 0.0
  %v102 = vmul.f32 %v98, 0.01
  %v103 = vsel %vm101, %v98, %v102
  %v104 = vld [vmem:[%s1 + $0x20] sm:$0xff]
  %v105 = vld [vmem:[%s1 + $0x28] sm:$0xff]
  %v106 = vld [vmem:[%s1 + $0x30] sm:$0xff]
  %v107 = vld [vmem:[%s1 + $0x38] sm:$0xff]
  %v108 = vlaneseq
  %v109 = vshrl.u32 %v108, 7
  %v110 = vsub.s32 1, %v109
  %v111 = vrot.slane %v18, %v110
  %v113 = vsel %vm27, %v103, 0
  %115 = vmatprep.subr.mxu0 0.0
  %116 = vmatpush1.msra.mxu0 %v104
  %117 = vmatprep.subr.mxu0 0.0
  %118 = vmatpush1.msra.mxu0 %v105
  %119 = vmatprep.subr.mxu0 0.0
  %120 = vmatpush1.msra.mxu0 %v106
  %121 = vmatprep.subr.mxu0 0.0
  %122 = vmatpush1.msra.mxu0 %v107
  %123 = vmatprep.subr.mxu0 0.0
  %124 = vmatpush1.msra.mxu0 0.0
  %125 = vmatprep.subr.mxu0 0.0
  %126 = vmatpush1.msra.mxu0 0.0
  %127 = vmatprep.subr.mxu0 0.0
  %128 = vmatpush1.msra.mxu0 0.0
  %129 = vmatprep.subr.mxu0 0.0
  %130 = vmatpush1.msra.mxu0 0.0
  %131 = vmatprep.subr.mxu0 0.0
  %132 = vmatpush1.msra.mxu0 0.0
  %133 = vmatprep.subr.mxu0 0.0
  %134 = vmatpush1.msra.mxu0 0.0
  %135 = vmatprep.subr.mxu0 0.0
  %136 = vmatpush1.msra.mxu0 0.0
  %137 = vmatprep.subr.mxu0 0.0
  %138 = vmatpush1.msra.mxu0 0.0
  %139 = vmatprep.subr.mxu0 0.0
  %140 = vmatpush1.msra.mxu0 0.0
  %141 = vmatprep.subr.mxu0 0.0
  %142 = vmatpush1.msra.mxu0 0.0
  %143 = vmatprep.subr.mxu0 0.0
  %144 = vmatpush1.msra.mxu0 0.0
  %145 = vmatprep.subr.mxu0 0.0
  %146 = vmatpush1.msra.mxu0 0.0
  %147 = vmatprep.subr.mxu0 0.0
  %148 = vmatpush1.msra.mxu0 0.0
  %149 = vmatprep.subr.mxu0 0.0
  %150 = vmatpush1.msra.mxu0 0.0
  %151 = vmatprep.subr.mxu0 0.0
  %152 = vmatpush1.msra.mxu0 0.0
  %153 = vmatprep.subr.mxu0 0.0
  %154 = vmatpush1.msra.mxu0 0.0
  %155 = vmatprep.subr.mxu0 0.0
  %156 = vmatpush1.msra.mxu0 0.0
  %157 = vmatprep.subr.mxu0 0.0
  %158 = vmatpush1.msra.mxu0 0.0
  %159 = vmatprep.subr.mxu0 0.0
  %160 = vmatpush1.msra.mxu0 0.0
  %161 = vmatprep.subr.mxu0 0.0
  %162 = vmatpush1.msra.mxu0 0.0
  %163 = vmatprep.subr.mxu0 0.0
  %164 = vmatpush1.msra.mxu0 0.0
  %165 = vmatprep.subr.mxu0 0.0
  %166 = vmatpush1.msra.mxu0 0.0
  %167 = vmatprep.subr.mxu0 0.0
  %168 = vmatpush1.msra.mxu0 0.0
  %169 = vmatprep.subr.mxu0 0.0
  %170 = vmatpush1.msra.mxu0 0.0
  %171 = vmatprep.subr.mxu0 0.0
  %172 = vmatpush1.msra.mxu0 0.0
  %173 = vmatprep.subr.mxu0 0.0
  %174 = vmatpush1.msra.mxu0 0.0
  %175 = vmatprep.subr.mxu0 0.0
  %176 = vmatpush1.msra.mxu0 0.0
  %177 = vmatprep.subr.mxu0 0.0
  %178 = vmatpush1.msra.mxu0 0.0
  %179 = vmatprep.mubr.f32.mxu0 0.0
  %180 = vmatmul.mubr.f32.gmra.mrb[0].mxu0 %v113
  %v181 = vpop.f32.mrb[0].mxu0
  %v182 = vadd.f32 %v111, %v181
  %v183 = vpop.f32.mrb[0].mxu0
  %184 = vdwg.mxu0
  %vm185 = vcmp.gt.f32.partialorder %v182, 0.0
  %v186 = vmul.f32 %v182, 0.01
  %v187 = vsel %vm185, %v182, %v186
  %v188 = vld [vmem:[%s2] sm:$0xff]
  %v189 = vld [vmem:[%s2 + $0x8] sm:$0xff]
  %v190 = vld [vmem:[%s2 + $0x10] sm:$0xff]
  %v191 = vld [vmem:[%s2 + $0x18] sm:$0xff]
  %v192 = vlaneseq
  %v193 = vshrl.u32 %v192, 7
  %v194 = vsub.s32 2, %v193
  %v195 = vrot.slane %v18, %v194
  %v197 = vsel %vm27, %v187, 0
  %199 = vmatprep.subr.mxu0 0.0
  %200 = vmatpush1.msra.mxu0 %v188
  %201 = vmatprep.subr.mxu0 0.0
  %202 = vmatpush1.msra.mxu0 %v189
  %203 = vmatprep.subr.mxu0 0.0
  %204 = vmatpush1.msra.mxu0 %v190
  %205 = vmatprep.subr.mxu0 0.0
  %206 = vmatpush1.msra.mxu0 %v191
  %207 = vmatprep.subr.mxu0 0.0
  %208 = vmatpush1.msra.mxu0 0.0
  %209 = vmatprep.subr.mxu0 0.0
  %210 = vmatpush1.msra.mxu0 0.0
  %211 = vmatprep.subr.mxu0 0.0
  %212 = vmatpush1.msra.mxu0 0.0
  %213 = vmatprep.subr.mxu0 0.0
  %214 = vmatpush1.msra.mxu0 0.0
  %215 = vmatprep.subr.mxu0 0.0
  %216 = vmatpush1.msra.mxu0 0.0
  %217 = vmatprep.subr.mxu0 0.0
  %218 = vmatpush1.msra.mxu0 0.0
  %219 = vmatprep.subr.mxu0 0.0
  %220 = vmatpush1.msra.mxu0 0.0
  %221 = vmatprep.subr.mxu0 0.0
  %222 = vmatpush1.msra.mxu0 0.0
  %223 = vmatprep.subr.mxu0 0.0
  %224 = vmatpush1.msra.mxu0 0.0
  %225 = vmatprep.subr.mxu0 0.0
  %226 = vmatpush1.msra.mxu0 0.0
  %227 = vmatprep.subr.mxu0 0.0
  %228 = vmatpush1.msra.mxu0 0.0
  %229 = vmatprep.subr.mxu0 0.0
  %230 = vmatpush1.msra.mxu0 0.0
  %231 = vmatprep.subr.mxu0 0.0
  %232 = vmatpush1.msra.mxu0 0.0
  %233 = vmatprep.subr.mxu0 0.0
  %234 = vmatpush1.msra.mxu0 0.0
  %235 = vmatprep.subr.mxu0 0.0
  %236 = vmatpush1.msra.mxu0 0.0
  %237 = vmatprep.subr.mxu0 0.0
  %238 = vmatpush1.msra.mxu0 0.0
  %239 = vmatprep.subr.mxu0 0.0
  %240 = vmatpush1.msra.mxu0 0.0
  %241 = vmatprep.subr.mxu0 0.0
  %242 = vmatpush1.msra.mxu0 0.0
  %243 = vmatprep.subr.mxu0 0.0
  %244 = vmatpush1.msra.mxu0 0.0
  %245 = vmatprep.subr.mxu0 0.0
  %246 = vmatpush1.msra.mxu0 0.0
  %247 = vmatprep.subr.mxu0 0.0
  %248 = vmatpush1.msra.mxu0 0.0
  %249 = vmatprep.subr.mxu0 0.0
  %250 = vmatpush1.msra.mxu0 0.0
  %251 = vmatprep.subr.mxu0 0.0
  %252 = vmatpush1.msra.mxu0 0.0
  %253 = vmatprep.subr.mxu0 0.0
  %254 = vmatpush1.msra.mxu0 0.0
  %255 = vmatprep.subr.mxu0 0.0
  %256 = vmatpush1.msra.mxu0 0.0
  %257 = vmatprep.subr.mxu0 0.0
  %258 = vmatpush1.msra.mxu0 0.0
  %259 = vmatprep.subr.mxu0 0.0
  %260 = vmatpush1.msra.mxu0 0.0
  %261 = vmatprep.subr.mxu0 0.0
  %262 = vmatpush1.msra.mxu0 0.0
  %263 = vmatprep.mubr.f32.mxu0 0.0
  %264 = vmatmul.mubr.f32.gmra.mrb[0].mxu0 %v197
  %v265 = vpop.f32.mrb[0].mxu0
  %v266 = vadd.f32 %v195, %v265
  %v267 = vpop.f32.mrb[0].mxu0
  %268 = vdwg.mxu0
  %v269 = vmax.f32 %v266, 0.0
  %v270 = vld [vmem:[%s2 + $0x20] sm:$0xff]
  %v271 = vld [vmem:[%s2 + $0x28] sm:$0xff]
  %v272 = vlaneseq
  %v273 = vshrl.u32 %v272, 7
  %v274 = vsub.s32 3, %v273
  %v275 = vrot.slane %v18, %v274
  %vm276 = vcmask 130048
  %v278 = vsel %vm276, %v269, 0
  %280 = vmatprep.subr.mxu0 0.0
  %281 = vmatpush1.msra.mxu0 %v270
  %282 = vmatprep.subr.mxu0 0.0
  %283 = vmatpush1.msra.mxu0 %v271
  %284 = vmatprep.subr.mxu0 0.0
  %285 = vmatpush1.msra.mxu0 0.0
  %286 = vmatprep.subr.mxu0 0.0
  %287 = vmatpush1.msra.mxu0 0.0
  %288 = vmatprep.subr.mxu0 0.0
  %289 = vmatpush1.msra.mxu0 0.0
  %290 = vmatprep.subr.mxu0 0.0
  %291 = vmatpush1.msra.mxu0 0.0
  %292 = vmatprep.subr.mxu0 0.0
  %293 = vmatpush1.msra.mxu0 0.0
  %294 = vmatprep.subr.mxu0 0.0
  %295 = vmatpush1.msra.mxu0 0.0
  %296 = vmatprep.subr.mxu0 0.0
  %297 = vmatpush1.msra.mxu0 0.0
  %298 = vmatprep.subr.mxu0 0.0
  %299 = vmatpush1.msra.mxu0 0.0
  %300 = vmatprep.subr.mxu0 0.0
  %301 = vmatpush1.msra.mxu0 0.0
  %302 = vmatprep.subr.mxu0 0.0
  %303 = vmatpush1.msra.mxu0 0.0
  %304 = vmatprep.subr.mxu0 0.0
  %305 = vmatpush1.msra.mxu0 0.0
  %306 = vmatprep.subr.mxu0 0.0
  %307 = vmatpush1.msra.mxu0 0.0
  %308 = vmatprep.subr.mxu0 0.0
  %309 = vmatpush1.msra.mxu0 0.0
  %310 = vmatprep.subr.mxu0 0.0
  %311 = vmatpush1.msra.mxu0 0.0
  %312 = vmatprep.subr.mxu0 0.0
  %313 = vmatpush1.msra.mxu0 0.0
  %314 = vmatprep.subr.mxu0 0.0
  %315 = vmatpush1.msra.mxu0 0.0
  %316 = vmatprep.subr.mxu0 0.0
  %317 = vmatpush1.msra.mxu0 0.0
  %318 = vmatprep.subr.mxu0 0.0
  %319 = vmatpush1.msra.mxu0 0.0
  %320 = vmatprep.subr.mxu0 0.0
  %321 = vmatpush1.msra.mxu0 0.0
  %322 = vmatprep.subr.mxu0 0.0
  %323 = vmatpush1.msra.mxu0 0.0
  %324 = vmatprep.subr.mxu0 0.0
  %325 = vmatpush1.msra.mxu0 0.0
  %326 = vmatprep.subr.mxu0 0.0
  %327 = vmatpush1.msra.mxu0 0.0
  %328 = vmatprep.subr.mxu0 0.0
  %329 = vmatpush1.msra.mxu0 0.0
  %330 = vmatprep.subr.mxu0 0.0
  %331 = vmatpush1.msra.mxu0 0.0
  %332 = vmatprep.subr.mxu0 0.0
  %333 = vmatpush1.msra.mxu0 0.0
  %334 = vmatprep.subr.mxu0 0.0
  %335 = vmatpush1.msra.mxu0 0.0
  %336 = vmatprep.subr.mxu0 0.0
  %337 = vmatpush1.msra.mxu0 0.0
  %338 = vmatprep.subr.mxu0 0.0
  %339 = vmatpush1.msra.mxu0 0.0
  %340 = vmatprep.subr.mxu0 0.0
  %341 = vmatpush1.msra.mxu0 0.0
  %342 = vmatprep.subr.mxu0 0.0
  %343 = vmatpush1.msra.mxu0 0.0
  %344 = vmatprep.mubr.f32.mxu0 0.0
  %345 = vmatmul.mubr.f32.gmra.mrb[0].mxu0 %v278
  %v346 = vpop.f32.mrb[0].mxu0
  %v347 = vadd.f32 %v275, %v346
  %v348 = vpop.f32.mrb[0].mxu0
  %349 = vdwg.mxu0
  %v350 = vmax.f32 %v347, 0.0
  %v351 = vld [vmem:[%s2 + $0x30] sm:$0xff]
  %v352 = vld [vmem:[%s2 + $0x38] sm:$0xff]
  %v354 = vsel %vm276, %v350, 0
  %356 = vmatprep.subr.mxu0 0.0
  %357 = vmatpush1.msra.mxu0 %v351
  %358 = vmatprep.subr.mxu0 0.0
  %359 = vmatpush1.msra.mxu0 %v352
  %360 = vmatprep.subr.mxu0 0.0
  %361 = vmatpush1.msra.mxu0 0.0
  %362 = vmatprep.subr.mxu0 0.0
  %363 = vmatpush1.msra.mxu0 0.0
  %364 = vmatprep.subr.mxu0 0.0
  %365 = vmatpush1.msra.mxu0 0.0
  %366 = vmatprep.subr.mxu0 0.0
  %367 = vmatpush1.msra.mxu0 0.0
  %368 = vmatprep.subr.mxu0 0.0
  %369 = vmatpush1.msra.mxu0 0.0
  %370 = vmatprep.subr.mxu0 0.0
  %371 = vmatpush1.msra.mxu0 0.0
  %372 = vmatprep.subr.mxu0 0.0
  %373 = vmatpush1.msra.mxu0 0.0
  %374 = vmatprep.subr.mxu0 0.0
  %375 = vmatpush1.msra.mxu0 0.0
  %376 = vmatprep.subr.mxu0 0.0
  %377 = vmatpush1.msra.mxu0 0.0
  %378 = vmatprep.subr.mxu0 0.0
  %379 = vmatpush1.msra.mxu0 0.0
  %380 = vmatprep.subr.mxu0 0.0
  %381 = vmatpush1.msra.mxu0 0.0
  %382 = vmatprep.subr.mxu0 0.0
  %383 = vmatpush1.msra.mxu0 0.0
  %384 = vmatprep.subr.mxu0 0.0
  %385 = vmatpush1.msra.mxu0 0.0
  %386 = vmatprep.subr.mxu0 0.0
  %387 = vmatpush1.msra.mxu0 0.0
  %388 = vmatprep.subr.mxu0 0.0
  %389 = vmatpush1.msra.mxu0 0.0
  %390 = vmatprep.subr.mxu0 0.0
  %391 = vmatpush1.msra.mxu0 0.0
  %392 = vmatprep.subr.mxu0 0.0
  %393 = vmatpush1.msra.mxu0 0.0
  %394 = vmatprep.subr.mxu0 0.0
  %395 = vmatpush1.msra.mxu0 0.0
  %396 = vmatprep.subr.mxu0 0.0
  %397 = vmatpush1.msra.mxu0 0.0
  %398 = vmatprep.subr.mxu0 0.0
  %399 = vmatpush1.msra.mxu0 0.0
  %400 = vmatprep.subr.mxu0 0.0
  %401 = vmatpush1.msra.mxu0 0.0
  %402 = vmatprep.subr.mxu0 0.0
  %403 = vmatpush1.msra.mxu0 0.0
  %404 = vmatprep.subr.mxu0 0.0
  %405 = vmatpush1.msra.mxu0 0.0
  %406 = vmatprep.subr.mxu0 0.0
  %407 = vmatpush1.msra.mxu0 0.0
  %408 = vmatprep.subr.mxu0 0.0
  %409 = vmatpush1.msra.mxu0 0.0
  %410 = vmatprep.subr.mxu0 0.0
  %411 = vmatpush1.msra.mxu0 0.0
  %412 = vmatprep.subr.mxu0 0.0
  %413 = vmatpush1.msra.mxu0 0.0
  %414 = vmatprep.subr.mxu0 0.0
  %415 = vmatpush1.msra.mxu0 0.0
  %416 = vmatprep.subr.mxu0 0.0
  %417 = vmatpush1.msra.mxu0 0.0
  %418 = vmatprep.subr.mxu0 0.0
  %419 = vmatpush1.msra.mxu0 0.0
  %420 = vmatprep.mubr.f32.mxu0 0.0
  %421 = vmatmul.mubr.f32.gmra.mrb[0].mxu0 %v354
  %v422 = vpop.f32.mrb[0].mxu0
  %v423 = vadd.f32 0.0, %v422
  %v424 = vpop.f32.mrb[0].mxu0
  %425 = vdwg.mxu0
  %v426 = vlaneseq
  %v427 = vshrl.u32 %v426, 7
  %v428 = vsub.s32 4, %v427
  %v429 = vrot.slane %v18, %v428
  %v430 = vadd.f32 %v423, %v429
  %v431 = vsub.f32 0.0, %v430
  %v432 = vmul.f32 %v431, 1.442695
  %v433 = vpow.pop %v432
  %v434 = vadd.f32 %v433, 1.0
  %v435 = vrcp.pop %v434
  %v436 = vmul.f32 1.0, %v435
  %vm437 = vcmask 15360
  %438 = vst.msk [vmem:[%s4] sm:$0xff] %vm437, %v436
  // Predicated region
  $region18: #{linear_probe_forward.1} parent=0 // pred_check
    _
  $region19: #{linear_probe_forward.1} parent=0 // pred_check_branch
    %440 = sbr.rel (0) target = $region21
  $region20: #{linear_probe_forward.1} parent=0 // pred_region
    _
  $region21: #{linear_probe_forward.1} parent=0 // pred_fallthru
    _
  // Predicated region
  $region22: #{linear_probe_forward.1} parent=0 // pred_check
    _
  $region23: #{linear_probe_forward.1} parent=0 // pred_check_branch
    %442 = sbr.rel (0) target = $region25
  $region24: #{linear_probe_forward.1} parent=0 // pred_region
    _
  $region25: #{linear_probe_forward.1} parent=0 // pred_fallthru
    _

</llo_original>
